<compile_context>
chip_gen: v5e
topology: v5e:2x2
jax: 0.10.0
libtpu: 0.0.40
codegen_flags: <defaults>
</compile_context>

<pallas_src>
import jax
import jax.numpy as jnp
import numpy as np
from jax.experimental import pallas as pl
from jax.experimental.pallas import tpu as pltpu


def _sdrop_kernel(mask_ref, x_ref, o_ref):
    """x block: (tB, tR, W); mask block: (tB, W) per-batch lane pattern."""
    x = x_ref[...].astype(jnp.float32)
    m = mask_ref[...][:, None, :]              # broadcast over the row axis
    o_ref[...] = (x * m).astype(o_ref.dtype)


def _choose_tiles(B, R, W, itemsize):
    """Pick (tB, tR) respecting (sublane, 128) tiling and ~2 MiB per buffer."""
    budget = 2 * 1024 * 1024                       # safe on v5e/v6e/v7x defaults
    sub = {4: 8, 2: 16, 1: 32}.get(itemsize, 8)    # sublane granularity of x dtype
    tB = B if B <= 8 else 8
    max_rows = max(sub, budget // max(1, tB * W * itemsize))
    tR = R if R <= max_rows else max(sub, (max_rows // sub) * sub)
    return tB, tR


def spatial_dropout(x, drop_prob, seed=0, training=True):
    """JAX/Pallas equivalent of Spatial_Dropout.forward for 3-D (B, T, C) input."""
    if (not training) or drop_prob == 0.0:
        return x
    if drop_prob == 1.0:
        return jnp.zeros_like(x)                   # noise.fill_(0) path

    # TODO(synk): >3-D inputs (mask over dim 2 with several broadcast dims) not covered.
    assert x.ndim == 3, "kernel covers the canonical 3-D (B, T, C) use case"
    B, T, C = x.shape
    keep_prob = 1.0 - float(drop_prob)

    # Per-(batch, channel) dropout mask: 0 (dropped) or 1/keep_prob (kept).
    key = jax.random.PRNGKey(seed)
    keep = jax.random.bernoulli(key, p=keep_prob, shape=(B, C))
    mask = keep.astype(jnp.float32) * (1.0 / keep_prob)          # (B, C)

    # Present a lane-dense (last-dim multiple of 128) view when possible.
    if (C % 128 != 0) and (128 % C == 0) and ((T * C) % 128 == 0):
        W = 128
        lane_mask = jnp.tile(mask, (1, W // C))                  # (B, 128)
    else:
        W = C            # already lane-dense if C % 128 == 0; else general fallback
        lane_mask = mask
    R = (T * C) // W
    x3 = x.reshape(B, R, W)                                      # free reshape

    itemsize = jnp.dtype(x.dtype).itemsize
    tB, tR = _choose_tiles(B, R, W, itemsize)
    grid = (pl.cdiv(B, tB), pl.cdiv(R, tR))

    out3 = pl.pallas_call(
        _sdrop_kernel,
        out_shape=jax.ShapeDtypeStruct((B, R, W), x.dtype),
        grid=grid,
        in_specs=[
            pl.BlockSpec((tB, W), lambda i, j: (i, 0)),          # mask pattern
            pl.BlockSpec((tB, tR, W), lambda i, j: (i, j, 0)),   # x tile
        ],
        out_specs=pl.BlockSpec((tB, tR, W), lambda i, j: (i, j, 0)),
        compiler_params=pltpu.CompilerParams(
            dimension_semantics=("parallel", "parallel"),
        ),
        cost_estimate=pl.CostEstimate(
            flops=B * T * C,
            transcendentals=0,
            bytes_accessed=2 * B * T * C * itemsize + B * W * 4,
        ),
    )(lane_mask, x3)
    return out3.reshape(B, T, C)


if __name__ == "__main__":
    key = jax.random.PRNGKey(0)
    B, T, C = 2, 8, 32
    x = jax.random.normal(key, (B, T, C), dtype=jnp.float32)

    drop_prob = 0.3
    y = spatial_dropout(x, drop_prob, seed=0, training=True)
    y = jax.block_until_ready(y)

    # --- sanity checks of the spatial-dropout semantics ---
    assert y.shape == x.shape and y.dtype == x.dtype
    xn, yn = np.asarray(x), np.asarray(y)
    ratio = yn / xn                                   # x ~ N(0,1): never exactly 0
    # (1) mask is constant along the seq dimension
    assert np.allclose(ratio, ratio[:, :1, :], atol=1e-5)
    # (2) mask values are either 0 (dropped) or 1/(1-p) (kept & rescaled)
    scale = 1.0 / (1.0 - drop_prob)
    m = ratio[:, 0, :]
    assert np.all(np.isclose(m, 0.0, atol=1e-5) | np.isclose(m, scale, atol=1e-4))
    # (3) eval mode / p == 0 are identity
    assert np.array_equal(np.asarray(spatial_dropout(x, drop_prob, training=False)), xn)
    assert np.array_equal(np.asarray(spatial_dropout(x, 0.0)), xn)
    # (4) p == 1 zeros everything
    assert np.all(np.asarray(spatial_dropout(x, 1.0)) == 0.0)

    print("KERNEL_OK")
</pallas_src>

<mosaic_0001>
module attributes {stable_mosaic.version = 11 : i64} {
  func.func @_sdrop_kernel(%arg0: i32, %arg1: i32, %arg2: memref<2x128xf32, #tpu.memory_space<vmem>>, %arg3: memref<2x2x128xf32, #tpu.memory_space<vmem>>, %arg4: memref<2x2x128xf32, #tpu.memory_space<vmem>>) attributes {dimension_semantics = [#tpu.dimension_semantics<parallel>, #tpu.dimension_semantics<parallel>], iteration_bounds = array<i64: 1, 1>, scalar_prefetch = 0 : i64, scratch_operands = 0 : i64, tpu.core_type = #tpu.core_type<tc>, window_params = [{transform_indices = @transform_0, window_bounds = array<i64: 2, 128>}, {transform_indices = @transform_1, window_bounds = array<i64: 2, 2, 128>}, {transform_indices = @transform_2, window_bounds = array<i64: 2, 2, 128>}]} {
    %c0 = arith.constant 0 : index
    %c0_0 = arith.constant 0 : index
    %c0_1 = arith.constant 0 : index
    %0 = vector.load %arg3[%c0, %c0_0, %c0_1] : memref<2x2x128xf32, #tpu.memory_space<vmem>>, vector<2x2x128xf32>
    %c0_2 = arith.constant 0 : index
    %c0_3 = arith.constant 0 : index
    %1 = vector.load %arg2[%c0_2, %c0_3] : memref<2x128xf32, #tpu.memory_space<vmem>>, vector<2x128xf32>
    %2 = vector.shape_cast %1 : vector<2x128xf32> to vector<2x1x128xf32>
    %3 = vector.broadcast %2 : vector<2x1x128xf32> to vector<2x2x128xf32>
    %4 = arith.mulf %0, %3 : vector<2x2x128xf32>
    %c0_4 = arith.constant 0 : index
    %c0_5 = arith.constant 0 : index
    %c0_6 = arith.constant 0 : index
    %5 = vector.load %arg4[%c0_4, %c0_5, %c0_6] : memref<2x2x128xf32, #tpu.memory_space<vmem>>, vector<2x2x128xf32>
    tpu.vector_store %arg4[%c0_4, %c0_5, %c0_6], %4 {strides = array<i32>} : memref<2x2x128xf32, #tpu.memory_space<vmem>>, vector<2x2x128xf32>,
    return
  }
  func.func @transform_0(%arg0: i32, %arg1: i32) -> (i32, i32) {
    %c0_i32 = arith.constant 0 : i32
    %c0_i32_0 = arith.constant 0 : i32
    return %arg0, %c0_i32 : i32, i32
  }
  func.func @transform_1(%arg0: i32, %arg1: i32) -> (i32, i32, i32) {
    %c0_i32 = arith.constant 0 : i32
    %c0_i32_0 = arith.constant 0 : i32
    return %arg0, %arg1, %c0_i32 : i32, i32, i32
  }
  func.func @transform_2(%arg0: i32, %arg1: i32) -> (i32, i32, i32) {
    %c0_i32 = arith.constant 0 : i32
    %c0_i32_0 = arith.constant 0 : i32
    return %arg0, %arg1, %c0_i32 : i32, i32, i32
  }
}

</mosaic_0001>

<llo_original>
// kernel: tpu_custom_call.1
$region0: #{tpu_custom_call.1}
  #allocation0 [shape = 'u32[]', space=smem, size = 0x4, offset = 0x4, fixed_abs, tag = 'smem constant byte address 0x4 - core index']
  #allocation1 [shape = 'u32[72,128]{1,0:T(1,128)}', space=vmem, size = 0x9000, scoped, tag = 'internal scratch']
  %s0 = inlined_call_operand.hbm [shape: f32[2,128], index: 0, kind: input, shape index: {}]
  %s1 = inlined_call_operand.hbm [shape: f32[2,2,128], index: 1, kind: input, shape index: {}]
  %s2 = inlined_call_operand.hbm [shape: f32[2,2,128], index: 2, kind: output, shape index: {}]
  %s3 = sld [smem:[#allocation0]]
  $region26: #{tpu_custom_call.1} parent=0
    _
  %s5 = ssub.s32 1, %s3
  %s6 = scalar_select 0, %s5, %s3
  $region1: #{tpu_custom_call.1} parent=0
    #allocation2 [shape = 'u8[1024]{0}', space=vmem, size = 0x400, scoped, tag = 'input window, operand 0, single buffered']
    #allocation3 [shape = 's32[1]{0}', space=sflag, size = 0x4, scoped, tag = 'scoped memory for tpu_custom_call.1']
    #allocation4 [shape = 's32[1]{0}', space=sflag, size = 0x4, scoped, tag = 'scoped memory for tpu_custom_call.1']
    #allocation5 [shape = 'u8[2048]{0}', space=vmem, size = 0x800, scoped, tag = 'input window, operand 1, single buffered']
    #allocation6 [shape = 's32[1]{0}', space=sflag, size = 0x4, scoped, tag = 'scoped memory for tpu_custom_call.1']
    #allocation7 [shape = 'u8[2048]{0}', space=vmem, size = 0x800, scoped, tag = 'output window, operand 0, single buffered']
    %7 = vsyncpa [#allocation3], 0
    %8 = vsyncpa [#allocation6], 0
    %9 = vsyncpa [#allocation4], 0
    // Predicated region
    $region2: #{tpu_custom_call.1} parent=1 // pred_check
      _
    $region3: #{tpu_custom_call.1} parent=1 // pred_check_branch
      %11 = sbr.rel (0) target = $region5
    $region4: #{tpu_custom_call.1} parent=1 // pred_region
      %13 = vsyncadd [#allocation3], 0
      %s15 = sshll.u32 %s0, 4
      %s16 = int_to_ptr.hbm [resolvable:$true] %s15
      %s17 = sshll.u32 [#allocation2], 4
      %s18 = int_to_ptr.vmem [resolvable:$true] %s17
      %20 = dma.hbm_to_vmem [thread:$0]  %s16, 32, %s18, [#allocation3]
    $region5: #{tpu_custom_call.1} parent=1 // pred_fallthru
      _
    // Predicated region
    $region6: #{tpu_custom_call.1} parent=1 // pred_check
      _
    $region7: #{tpu_custom_call.1} parent=1 // pred_check_branch
      %22 = sbr.rel (0) target = $region9
    $region8: #{tpu_custom_call.1} parent=1 // pred_region
      %24 = vsyncadd [#allocation6], 0
      %s25 = sshll.u32 %s1, 4
      %s26 = int_to_ptr.hbm [resolvable:$true] %s25
      %s27 = sshll.u32 [#allocation5], 4
      %s28 = int_to_ptr.vmem [resolvable:$true] %s27
      %33 = dma.hbm_to_vmem [thread:$0]  %s26, 64, %s28, [#allocation6], 32, 32, 2
    $region9: #{tpu_custom_call.1} parent=1 // pred_fallthru
      _
    // Predicated region
    $region10: #{tpu_custom_call.1} parent=1 // pred_check
      _
    $region11: #{tpu_custom_call.1} parent=1 // pred_check_branch
      %35 = sbr.rel (0) target = $region13
    $region12: #{tpu_custom_call.1} parent=1 // pred_region
      %37 = dma.done [#allocation3], 32
    $region13: #{tpu_custom_call.1} parent=1 // pred_fallthru
      _
    // Predicated region
    $region14: #{tpu_custom_call.1} parent=1 // pred_check
      _
    $region15: #{tpu_custom_call.1} parent=1 // pred_check_branch
      %39 = sbr.rel (0) target = $region17
    $region16: #{tpu_custom_call.1} parent=1 // pred_region
      %41 = dma.done [#allocation6], 64
    $region17: #{tpu_custom_call.1} parent=1 // pred_fallthru
      _
    %v42 = vld [vmem:[#allocation5] sm:$0x3]
    %v43 = vld [vmem:[#allocation5 + $0x2] sm:$0x3]
    %v44 = vld [vmem:[#allocation2] sm:$0x3]
    %v46 = vrot.slane %v44, 1
    %v47 = vperm.slane %v44, 0
    %v48 = vperm.slane %v46, 0
    %v51 = vmul.f32 %v42, %v47
    %v52 = vmul.f32 %v43, %v48
    %53 = vst [vmem:[#allocation7] sm:$0x3] %v51
    %54 = vst [vmem:[#allocation7 + $0x2] sm:$0x3] %v52
    // Predicated region
    $region18: #{tpu_custom_call.1} parent=1 // pred_check
      _
    $region19: #{tpu_custom_call.1} parent=1 // pred_check_branch
      %56 = sbr.rel (0) target = $region21
    $region20: #{tpu_custom_call.1} parent=1 // pred_region
      %58 = vsyncadd [#allocation4], 0
      %s59 = sshll.u32 [#allocation7], 4
      %s60 = int_to_ptr.vmem [resolvable:$true] %s59
      %s61 = sshll.u32 %s2, 4
      %s62 = int_to_ptr.hbm [resolvable:$true] %s61
      %67 = dma.vmem_to_hbm [thread:$0]  %s60, 64, %s62, [#allocation4], 32, 32, 2
    $region21: #{tpu_custom_call.1} parent=1 // pred_fallthru
      _
    // Predicated region
    $region22: #{tpu_custom_call.1} parent=1 // pred_check
      _
    $region23: #{tpu_custom_call.1} parent=1 // pred_check_branch
      %69 = sbr.rel (0) target = $region25
    $region24: #{tpu_custom_call.1} parent=1 // pred_region
      %71 = dma.done [#allocation4], 64
    $region25: #{tpu_custom_call.1} parent=1 // pred_fallthru
      _
    %72 = vsyncpa [#allocation3], 1
    %73 = vsyncpa [#allocation6], 1
    %74 = vsyncpa [#allocation4], 1

</llo_original>
